<compile_context>
chip_gen: v7x
topology: tpu7x:2x2x1
jax: 0.10.0
libtpu: 0.0.40
codegen_flags: <defaults>
</compile_context>

<pallas_src>
import functools

import jax
import jax.numpy as jnp
from jax.experimental import pallas as pl
from jax.experimental.pallas import tpu as pltpu


def _round_up(x, m):
    return ((x + m - 1) // m) * m


def basic_conv_pallas(x_nchw, weight, bn_gamma=None, bn_beta=None,
                      bn_mean=None, bn_var=None, conv_bias=None, *,
                      stride=1, padding=0, dilation=1, groups=1,
                      relu=True, eps=1e-5,
                      compute_dtype=jnp.float32, out_dtype=None,
                      tile_rows=256):
    """Conv2d + BatchNorm2d(eval, optional) + ReLU(optional). NCHW in / NCHW out."""
    assert dilation == 1, "TODO(synk): dilated conv not implemented"
    assert groups == 1, "TODO(synk): grouped conv not implemented"
    N, Cin, H, W = x_nchw.shape
    Cout, Cin_w, KH, KW = weight.shape
    assert Cin == Cin_w
    s = int(stride)
    assert s >= 1 and padding >= 0
    if out_dtype is None:
        out_dtype = x_nchw.dtype

    Hp, Wp = H + 2 * padding, W + 2 * padding
    Ho = (Hp - KH) // s + 1
    Wo = (Wp - KW) // s + 1
    assert Ho > 0 and Wo > 0

    Cin_p = _round_up(Cin, 8)      # sublane-aligned input channels
    Cout_p = _round_up(Cout, 8)    # sublane-aligned output channels
    R = KH * KW
    RK = R * Cin_p                 # fused contraction length

    # ---- stride-phase geometry (s == 1 degenerates to a plain flatten) ----
    Hp2, Wp2 = _round_up(Hp, s), _round_up(Wp, s)
    Hph, Wph = Hp2 // s, Wp2 // s
    M = Ho * Wph                   # rows computed per image (Wph - Wo junk cols/row)

    offs = []                      # (phase index, stride-1 flat offset) per tap
    for kh in range(KH):
        for kw in range(KW):
            offs.append(((kh % s) * s + (kw % s),
                         (kh // s) * Wph + (kw // s)))
    max_off = max(o for _, o in offs)

    # Lane-dense row tiles; the current+next window trick needs TM >= max_off.
    TM = _round_up(max(max_off, min(tile_rows, M)), 128)
    T = -(-M // TM)                                   # row tiles per image
    L = max((T + 1) * TM, _round_up(Hph * Wph, TM))   # padded flat-row length

    # ---- fold BN (inference) + conv bias into per-channel scale / bias ----
    if bn_gamma is not None:
        scale_c = (bn_gamma / jnp.sqrt(bn_var + eps)).astype(jnp.float32)
        bias_c = bn_beta.astype(jnp.float32) - bn_mean.astype(jnp.float32) * scale_c
        if conv_bias is not None:
            bias_c = bias_c + scale_c * conv_bias.astype(jnp.float32)
    else:
        scale_c = jnp.ones((Cout,), jnp.float32)
        bias_c = (conv_bias.astype(jnp.float32) if conv_bias is not None
                  else jnp.zeros((Cout,), jnp.float32))
    scale = jnp.pad(scale_c, (0, Cout_p - Cout)).reshape(Cout_p, 1)
    bias = jnp.pad(bias_c, (0, Cout_p - Cout)).reshape(Cout_p, 1)

    # ---- weight: (Cout, Cin, KH, KW) -> (Cout_p, R*Cin_p), tap-major ----
    w2 = jnp.pad(weight, ((0, Cout_p - Cout), (0, Cin_p - Cin), (0, 0), (0, 0)))
    w2 = jnp.transpose(w2, (0, 2, 3, 1)).reshape(Cout_p, RK).astype(compute_dtype)

    # ---- input: stays NCHW; pad channels+spatial, split stride phases, flatten
    xp = jnp.pad(x_nchw, ((0, 0), (0, Cin_p - Cin),
                          (padding, padding + (Hp2 - Hp)),
                          (padding, padding + (Wp2 - Wp))))
    xp = xp.reshape(N, Cin_p, Hph, s, Wph, s)
    xp = jnp.transpose(xp, (0, 3, 5, 1, 2, 4))        # (N, s, s, Cin_p, Hph, Wph)
    xf = xp.reshape(N, s * s, Cin_p, Hph * Wph)
    xf = jnp.pad(xf, ((0, 0), (0, 0), (0, 0), (0, L - Hph * Wph)))
    xf = xf.astype(compute_dtype)

    s2 = s * s

    def kernel(xa_ref, xb_ref, w_ref, sc_ref, bi_ref, o_ref):
        # Current + next row window of the phase-split input (covers the halo).
        xcat = jnp.concatenate([xa_ref[0], xb_ref[0]], axis=-1)   # (s2, Cin_p, 2*TM)
        # In-VMEM im2col: one contiguous stride-1 slab per tap, packed along K.
        pieces = [xcat[p, :, off:off + TM] for (p, off) in offs]
        slab = jnp.concatenate(pieces, axis=0)                    # (RK, TM)
        # Single fused MXU contraction, f32 accumulation; result stays in vregs.
        y = jnp.dot(w_ref[...], slab,
                    preferred_element_type=jnp.float32)           # (Cout_p, TM)
        # Fused BN(eval) + optional ReLU epilogue; exactly one store per tile.
        y = y * sc_ref[...] + bi_ref[...]
        if relu:
            y = jnp.maximum(y, 0.0)
        o_ref[0] = y.astype(o_ref.dtype)

    out_flat = pl.pallas_call(
        kernel,
        out_shape=jax.ShapeDtypeStruct((N, Cout_p, T * TM), out_dtype),
        grid_spec=pltpu.PrefetchScalarGridSpec(
            num_scalar_prefetch=0,
            grid=(N, T),
            in_specs=[
                # current row window
                pl.BlockSpec((1, s2, Cin_p, TM), lambda n, t: (n, 0, 0, t)),
                # next row window (halo)
                pl.BlockSpec((1, s2, Cin_p, TM), lambda n, t: (n, 0, 0, t + 1)),
                # weights / BN scale / BN bias: constant index_map -> resident
                pl.BlockSpec((Cout_p, RK), lambda n, t: (0, 0)),
                pl.BlockSpec((Cout_p, 1), lambda n, t: (0, 0)),
                pl.BlockSpec((Cout_p, 1), lambda n, t: (0, 0)),
            ],
            out_specs=pl.BlockSpec((1, Cout_p, TM), lambda n, t: (n, 0, t)),
        ),
        compiler_params=pltpu.CompilerParams(
            dimension_semantics=("parallel", "parallel"),
            vmem_limit_bytes=32 * 1024 * 1024,   # headroom even on v7x (64 MiB/TC)
        ),
    )(xf, xf, w2, scale, bias)

    # Drop junk columns (w >= Wo) and channel padding; already channel-major NCHW.
    out = out_flat[:, :Cout, :M].reshape(N, Cout, Ho, Wph)[:, :, :, :Wo]
    return out


def _reference(x, w, gamma, beta, mean, var, *, stride, padding, relu=True, eps=1e-5):
    y = jax.lax.conv_general_dilated(
        x, w, window_strides=(stride, stride),
        padding=((padding, padding), (padding, padding)),
        dimension_numbers=("NCHW", "OIHW", "NCHW"))
    sc = (gamma / jnp.sqrt(var + eps)).reshape(1, -1, 1, 1)
    bi = (beta - mean * gamma / jnp.sqrt(var + eps)).reshape(1, -1, 1, 1)
    y = y * sc + bi
    return jnp.maximum(y, 0.0) if relu else y


if __name__ == "__main__":
    keys = jax.random.split(jax.random.PRNGKey(0), 12)

    # -- Config 1: BasicConv(4, 8, kernel_size=3, stride=1, padding=1) --
    N, Cin, H, W = 2, 4, 16, 16
    Cout, K = 8, 3
    x = jax.random.normal(keys[0], (N, Cin, H, W), jnp.float32)
    w = jax.random.normal(keys[1], (Cout, Cin, K, K), jnp.float32) * 0.1
    gamma = 1.0 + 0.1 * jax.random.normal(keys[2], (Cout,), jnp.float32)
    beta = 0.1 * jax.random.normal(keys[3], (Cout,), jnp.float32)
    mean = 0.1 * jax.random.normal(keys[4], (Cout,), jnp.float32)
    var = jnp.abs(1.0 + 0.1 * jax.random.normal(keys[5], (Cout,), jnp.float32))

    ref1 = _reference(x, w, gamma, beta, mean, var, stride=1, padding=1)
    f1 = jax.jit(functools.partial(basic_conv_pallas, stride=1, padding=1))
    out1 = jax.block_until_ready(f1(x, w, gamma, beta, mean, var))
    assert out1.shape == (N, Cout, H, W)
    assert jnp.allclose(out1, ref1, atol=1e-4, rtol=1e-4), "f32 stride=1 mismatch"

    # bf16-MXU / f32-accumulate fast path (explicit opt-in, per review).
    f1b = jax.jit(functools.partial(basic_conv_pallas, stride=1, padding=1,
                                    compute_dtype=jnp.bfloat16))
    out1b = jax.block_until_ready(f1b(x, w, gamma, beta, mean, var))
    assert jnp.allclose(out1b, ref1, atol=3e-2, rtol=3e-2), "bf16 stride=1 mismatch"

    # -- Config 2: stride=2 (exercises the wrapper stride-phase split) --
    ref2 = _reference(x, w, gamma, beta, mean, var, stride=2, padding=1)
    f2 = jax.jit(functools.partial(basic_conv_pallas, stride=2, padding=1))
    out2 = jax.block_until_ready(f2(x, w, gamma, beta, mean, var))
    assert out2.shape == ref2.shape == (N, Cout, 8, 8)
    assert jnp.allclose(out2, ref2, atol=1e-4, rtol=1e-4), "f32 stride=2 mismatch"

    # -- Config 3: CBAM SpatialGate shape: BasicConv(2, 1, 7, padding=3, relu=False) --
    x3 = jax.random.normal(keys[6], (N, 2, H, W), jnp.float32)
    w3 = jax.random.normal(keys[7], (1, 2, 7, 7), jnp.float32) * 0.1
    g3 = 1.0 + 0.1 * jax.random.normal(keys[8], (1,), jnp.float32)
    b3 = 0.1 * jax.random.normal(keys[9], (1,), jnp.float32)
    m3 = 0.1 * jax.random.normal(keys[10], (1,), jnp.float32)
    v3 = jnp.abs(1.0 + 0.1 * jax.random.normal(keys[11], (1,), jnp.float32))
    ref3 = _reference(x3, w3, g3, b3, m3, v3, stride=1, padding=3, relu=False)
    f3 = jax.jit(functools.partial(basic_conv_pallas, stride=1, padding=3, relu=False))
    out3 = jax.block_until_ready(f3(x3, w3, g3, b3, m3, v3))
    assert out3.shape == (N, 1, H, W)
    assert jnp.allclose(out3, ref3, atol=1e-4, rtol=1e-4), "7x7 relu=False mismatch"

    print("KERNEL_OK")
</pallas_src>

<mosaic_0001>
module attributes {stable_mosaic.version = 11 : i64} {
  func.func @kernel(%arg0: i32, %arg1: i32, %arg2: memref<1x1x8x256xf32, #tpu.memory_space<vmem>>, %arg3: memref<1x1x8x256xf32, #tpu.memory_space<vmem>>, %arg4: memref<8x72xf32, #tpu.memory_space<vmem>>, %arg5: memref<8x1xf32, #tpu.memory_space<vmem>>, %arg6: memref<8x1xf32, #tpu.memory_space<vmem>>, %arg7: memref<1x8x256xf32, #tpu.memory_space<vmem>>) attributes {dimension_semantics = [#tpu.dimension_semantics<parallel>, #tpu.dimension_semantics<parallel>], iteration_bounds = array<i64: 2, 2>, scalar_prefetch = 0 : i64, scratch_operands = 0 : i64, tpu.core_type = #tpu.core_type<tc>, window_params = [{transform_indices = @transform_0, window_bounds = array<i64: 1, 1, 8, 256>}, {transform_indices = @transform_1, window_bounds = array<i64: 1, 1, 8, 256>}, {pipeline_mode = #tpu.pipeline_mode<synchronous>, transform_indices = @transform_2, window_bounds = array<i64: 8, 72>}, {pipeline_mode = #tpu.pipeline_mode<synchronous>, transform_indices = @transform_3, window_bounds = array<i64: 8, 1>}, {pipeline_mode = #tpu.pipeline_mode<synchronous>, transform_indices = @transform_4, window_bounds = array<i64: 8, 1>}, {transform_indices = @transform_5, window_bounds = array<i64: 1, 8, 256>}]} {
    %c0 = arith.constant 0 : index
    %c0_0 = arith.constant 0 : index
    %c0_1 = arith.constant 0 : index
    %c0_2 = arith.constant 0 : index
    %0 = vector.load %arg2[%c0, %c0_0, %c0_1, %c0_2] : memref<1x1x8x256xf32, #tpu.memory_space<vmem>>, vector<1x1x8x256xf32>
    %1 = vector.shape_cast %0 : vector<1x1x8x256xf32> to vector<1x8x256xf32>
    %c0_3 = arith.constant 0 : index
    %c0_4 = arith.constant 0 : index
    %c0_5 = arith.constant 0 : index
    %c0_6 = arith.constant 0 : index
    %2 = vector.load %arg3[%c0_3, %c0_4, %c0_5, %c0_6] : memref<1x1x8x256xf32, #tpu.memory_space<vmem>>, vector<1x1x8x256xf32>
    %3 = vector.shape_cast %2 : vector<1x1x8x256xf32> to vector<1x8x256xf32>
    %4 = tpu.concatenate %1, %3 in 2 : vector<1x8x256xf32>, vector<1x8x256xf32> -> vector<1x8x512xf32>
    %5 = vector.extract_strided_slice %4 {offsets = [0, 0, 0], sizes = [1, 8, 256], strides = [1, 1, 1]} : vector<1x8x512xf32> to vector<1x8x256xf32>
    %6 = vector.shape_cast %5 : vector<1x8x256xf32> to vector<8x256xf32>
    %7 = vector.extract_strided_slice %4 {offsets = [0, 0, 1], sizes = [1, 8, 256], strides = [1, 1, 1]} : vector<1x8x512xf32> to vector<1x8x256xf32>
    %8 = vector.shape_cast %7 : vector<1x8x256xf32> to vector<8x256xf32>
    %9 = vector.extract_strided_slice %4 {offsets = [0, 0, 2], sizes = [1, 8, 256], strides = [1, 1, 1]} : vector<1x8x512xf32> to vector<1x8x256xf32>
    %10 = vector.shape_cast %9 : vector<1x8x256xf32> to vector<8x256xf32>
    %11 = vector.extract_strided_slice %4 {offsets = [0, 0, 18], sizes = [1, 8, 256], strides = [1, 1, 1]} : vector<1x8x512xf32> to vector<1x8x256xf32>
    %12 = vector.shape_cast %11 : vector<1x8x256xf32> to vector<8x256xf32>
    %13 = vector.extract_strided_slice %4 {offsets = [0, 0, 19], sizes = [1, 8, 256], strides = [1, 1, 1]} : vector<1x8x512xf32> to vector<1x8x256xf32>
    %14 = vector.shape_cast %13 : vector<1x8x256xf32> to vector<8x256xf32>
    %15 = vector.extract_strided_slice %4 {offsets = [0, 0, 20], sizes = [1, 8, 256], strides = [1, 1, 1]} : vector<1x8x512xf32> to vector<1x8x256xf32>
    %16 = vector.shape_cast %15 : vector<1x8x256xf32> to vector<8x256xf32>
    %17 = vector.extract_strided_slice %4 {offsets = [0, 0, 36], sizes = [1, 8, 256], strides = [1, 1, 1]} : vector<1x8x512xf32> to vector<1x8x256xf32>
    %18 = vector.shape_cast %17 : vector<1x8x256xf32> to vector<8x256xf32>
    %19 = vector.extract_strided_slice %4 {offsets = [0, 0, 37], sizes = [1, 8, 256], strides = [1, 1, 1]} : vector<1x8x512xf32> to vector<1x8x256xf32>
    %20 = vector.shape_cast %19 : vector<1x8x256xf32> to vector<8x256xf32>
    %21 = vector.extract_strided_slice %4 {offsets = [0, 0, 38], sizes = [1, 8, 256], strides = [1, 1, 1]} : vector<1x8x512xf32> to vector<1x8x256xf32>
    %22 = vector.shape_cast %21 : vector<1x8x256xf32> to vector<8x256xf32>
    %23 = tpu.concatenate %6, %8, %10, %12, %14, %16, %18, %20, %22 in 0 : vector<8x256xf32>, vector<8x256xf32>, vector<8x256xf32>, vector<8x256xf32>, vector<8x256xf32>, vector<8x256xf32>, vector<8x256xf32>, vector<8x256xf32>, vector<8x256xf32> -> vector<72x256xf32>
    %c0_7 = arith.constant 0 : index
    %c0_8 = arith.constant 0 : index
    %24 = vector.load %arg4[%c0_7, %c0_8] : memref<8x72xf32, #tpu.memory_space<vmem>>, vector<8x72xf32>
    %cst = arith.constant dense<0.000000e+00> : vector<8x256xf32>
    %25 = tpu.matmul %24, %23, %cst {dimension_numbers = #tpu.dot_dimension_numbers<[1], [0], [0], [1], [0, 0, 1, 1], [], []>} : vector<8x72xf32>, vector<72x256xf32>, vector<8x256xf32> -> vector<8x256xf32>
    %c0_9 = arith.constant 0 : index
    %c0_10 = arith.constant 0 : index
    %26 = vector.load %arg5[%c0_9, %c0_10] : memref<8x1xf32, #tpu.memory_space<vmem>>, vector<8x1xf32>
    %27 = vector.broadcast %26 : vector<8x1xf32> to vector<8x256xf32>
    %28 = arith.mulf %25, %27 : vector<8x256xf32>
    %c0_11 = arith.constant 0 : index
    %c0_12 = arith.constant 0 : index
    %29 = vector.load %arg6[%c0_11, %c0_12] : memref<8x1xf32, #tpu.memory_space<vmem>>, vector<8x1xf32>
    %30 = vector.broadcast %29 : vector<8x1xf32> to vector<8x256xf32>
    %31 = arith.addf %28, %30 : vector<8x256xf32>
    %cst_13 = arith.constant 0.000000e+00 : f32
    %32 = vector.broadcast %cst_13 : f32 to vector<8x256xf32>
    %33 = arith.maximumf %31, %32 : vector<8x256xf32>
    %c0_14 = arith.constant 0 : index
    %c0_15 = arith.constant 0 : index
    %c0_16 = arith.constant 0 : index
    %34 = vector.load %arg7[%c0_14, %c0_15, %c0_16] : memref<1x8x256xf32, #tpu.memory_space<vmem>>, vector<1x8x256xf32>
    %35 = vector.shape_cast %34 : vector<1x8x256xf32> to vector<8x256xf32>
    %36 = vector.shape_cast %33 : vector<8x256xf32> to vector<1x8x256xf32>
    tpu.vector_store %arg7[%c0_14, %c0_15, %c0_16], %36 {strides = array<i32>} : memref<1x8x256xf32, #tpu.memory_space<vmem>>, vector<1x8x256xf32>,
    return
  }
  func.func @transform_0(%arg0: i32, %arg1: i32) -> (i32, i32, i32, i32) {
    %c0_i32 = arith.constant 0 : i32
    %c0_i32_0 = arith.constant 0 : i32
    %c0_i32_1 = arith.constant 0 : i32
    return %arg0, %c0_i32, %c0_i32_0, %arg1 : i32, i32, i32, i32
  }
  func.func @transform_1(%arg0: i32, %arg1: i32) -> (i32, i32, i32, i32) {
    %c1_i32 = arith.constant 1 : i32
    %0 = arith.addi %arg1, %c1_i32 : i32
    %c0_i32 = arith.constant 0 : i32
    %c0_i32_0 = arith.constant 0 : i32
    %c0_i32_1 = arith.constant 0 : i32
    return %arg0, %c0_i32, %c0_i32_0, %0 : i32, i32, i32, i32
  }
  func.func @transform_2(%arg0: i32, %arg1: i32) -> (i32, i32) {
    %c0_i32 = arith.constant 0 : i32
    %c0_i32_0 = arith.constant 0 : i32
    %c0_i32_1 = arith.constant 0 : i32
    return %c0_i32, %c0_i32_0 : i32, i32
  }
  func.func @transform_3(%arg0: i32, %arg1: i32) -> (i32, i32) {
    %c0_i32 = arith.constant 0 : i32
    %c0_i32_0 = arith.constant 0 : i32
    %c0_i32_1 = arith.constant 0 : i32
    return %c0_i32, %c0_i32_0 : i32, i32
  }
  func.func @transform_4(%arg0: i32, %arg1: i32) -> (i32, i32) {
    %c0_i32 = arith.constant 0 : i32
    %c0_i32_0 = arith.constant 0 : i32
    %c0_i32_1 = arith.constant 0 : i32
    return %c0_i32, %c0_i32_0 : i32, i32
  }
  func.func @transform_5(%arg0: i32, %arg1: i32) -> (i32, i32, i32) {
    %c0_i32 = arith.constant 0 : i32
    %c0_i32_0 = arith.constant 0 : i32
    return %arg0, %c0_i32, %arg1 : i32, i32, i32
  }
}

</mosaic_0001>

<llo_original>
// kernel: basic_conv_pallas.1
$region0: #{basic_conv_pallas.1}
  #allocation0 [shape = 'u32[]', space=smem, size = 0x4, offset = 0x4, fixed_abs, tag = 'smem constant byte address 0x4 - core index']
  #allocation1 [shape = 'u32[144,128]{1,0:T(1,128)}', space=vmem, size = 0x12000, scoped, tag = 'internal scratch']
  %s0 = inlined_call_operand.vmem [shape: f32[2,1,8,768], index: 0, kind: input, shape index: {}, may-alias: {0,1}]
  %s1 = inlined_call_operand.vmem [shape: f32[2,1,8,768], index: 1, kind: input, shape index: {}, may-alias: {0,1}]
  %s2 = inlined_call_operand.vmem [shape: f32[8,72], index: 2, kind: input, shape index: {}]
  %s3 = inlined_call_operand.vmem [shape: f32[8,1], index: 3, kind: input, shape index: {}]
  %s4 = inlined_call_operand.vmem [shape: f32[8,1], index: 4, kind: input, shape index: {}]
  %s5 = inlined_call_operand.vmem [shape: f32[2,8,512], index: 5, kind: output, shape index: {}]
  %s6 = sld [smem:[#allocation0]]
  $region53: #{basic_conv_pallas.1} parent=0
    _
  %s8 = ssub.s32 1, %s6
  %s9 = scalar_select 0, %s8, %s6
  loop: start=0, step=1, limit=6
  $region2: #{basic_conv_pallas.1} parent=0 // loop_pre_header
    _
  $region3: #{basic_conv_pallas.1} parent=0 // loop_header
    %s11 = sphi 0, %s15
    %p12 = scmp.ge.s32.totalorder %s11, 6
    %s18 = sphi 0, %s30
    %s19 = sphi 0, %s26
    %s20 = sphi 0, %s18
    %s21 = sphi 0, %s19
    %s22 = sphi 0, %s20
    %s23 = sphi 0, %s21
    %s35 = sphi 0, %s37
    %s38 = sphi 0, %s35
    %s39 = sphi 0, %s38
    %s55 = sphi 0, %s39
    %s65 = sphi 0, %s67
    %s68 = sphi 0, %s65
    %s69 = sphi 0, %s68
    %s85 = sphi 0, %s69
    %s89 = sphi 0, %s89
    %s91 = sphi 0, %s89
    %s92 = sphi 0, %s91
    %s106 = sphi 0, %s92
    %s110 = sphi 0, %s110
    %s112 = sphi 0, %s110
    %s113 = sphi 0, %s112
    %s127 = sphi 0, %s113
    %s131 = sphi 0, %s131
    %s133 = sphi 0, %s131
    %s134 = sphi 0, %s133
    %s148 = sphi 0, %s134
    %s156 = sphi 0, %s158
    %s159 = sphi 0, %s156
    %s160 = sphi 0, %s159
    %s176 = sphi 0, %s160
  $region4: #{basic_conv_pallas.1} parent=0 // loop_header_branch
    %14 = sbr.rel (%p12) target = $region8
  $region5: #{basic_conv_pallas.1} parent=0 // loop_body
    %s16 = ssub.s32 %s11, 1
    %s17 = ssub.s32 %s11, 2
    %s24 = sadd.s32 1, %s19
    %p25 = scmp.ge.s32.totalorder %s24, 2
    %s26 = scalar_select %p25, 0, %s24
    %s27 = sadd.s32 1, %s18
    %s28 = scalar_select %p25, %s27, %s18
    %p29 = scmp.ge.s32.totalorder %s28, 2
    %s30 = scalar_select %p29, 0, %s28
    %s31 = ssub.s32 %s18, %s30
    %s32 = ssub.s32 %s19, %s26
    %s33 = sor.u32 %s31, %s32
    %p34 = scmp.eq.s32.totalorder %s33, 0
    %s36 = sadd.s32 %s35, 1
    %s37 = scalar_select %p34, %s35, %s36
    %p40 = pneg %p34
    %p41 = scmp.eq.s32.totalorder %s11, 3
    %p42 = por %p40, %p41
    %p43 = scmp.ne.s32.totalorder %s35, %s38
    %p44 = scmp.eq.s32.totalorder %s11, 0
    %p45 = por %p43, %p44
    %p46 = scmp.ne.s32.totalorder %s35, %s38
    %p47 = scmp.eq.s32.totalorder %s16, 3
    %p48 = por %p46, %p47
    %p49 = scmp.ne.s32.totalorder %s38, %s39
    %p50 = scmp.eq.s32.totalorder %s16, 0
    %p51 = por %p49, %p50
    %p52 = scmp.ne.s32.totalorder %s38, %s39
    %p53 = scmp.eq.s32.totalorder %s17, 3
    %p54 = por %p52, %p53
    %p56 = scmp.ne.s32.totalorder %s39, %s55
    %p57 = scmp.eq.s32.totalorder %s17, 0
    %p58 = por %p56, %p57
    %s59 = sadd.s32 %s19, 1
    %s60 = sadd.s32 %s26, 1
    %s61 = ssub.s32 %s18, %s30
    %s62 = ssub.s32 %s59, %s60
    %s63 = sor.u32 %s61, %s62
    %p64 = scmp.eq.s32.totalorder %s63, 0
    %s66 = sadd.s32 %s65, 1
    %s67 = scalar_select %p64, %s65, %s66
    %p70 = pneg %p64
    %p71 = scmp.eq.s32.totalorder %s11, 3
    %p72 = por %p70, %p71
    %p73 = scmp.ne.s32.totalorder %s65, %s68
    %p74 = scmp.eq.s32.totalorder %s11, 0
    %p75 = por %p73, %p74
    %p76 = scmp.ne.s32.totalorder %s65, %s68
    %p77 = scmp.eq.s32.totalorder %s16, 3
    %p78 = por %p76, %p77
    %p79 = scmp.ne.s32.totalorder %s68, %s69
    %p80 = scmp.eq.s32.totalorder %s16, 0
    %p81 = por %p79, %p80
    %p82 = scmp.ne.s32.totalorder %s68, %s69
    %p83 = scmp.eq.s32.totalorder %s17, 3
    %p84 = por %p82, %p83
    %p86 = scmp.ne.s32.totalorder %s69, %s85
    %p87 = scmp.eq.s32.totalorder %s17, 0
    %p88 = por %p86, %p87
    %s90 = sadd.s32 %s89, 1
    %p93 = scmp.eq.s32.totalorder %s11, 3
    %p94 = scmp.ne.s32.totalorder %s89, %s91
    %p95 = scmp.eq.s32.totalorder %s11, 0
    %p96 = por %p94, %p95
    %p97 = scmp.ne.s32.totalorder %s89, %s91
    %p98 = scmp.eq.s32.totalorder %s16, 3
    %p99 = por %p97, %p98
    %p100 = scmp.ne.s32.totalorder %s91, %s92
    %p101 = scmp.eq.s32.totalorder %s16, 0
    %p102 = por %p100, %p101
    %p103 = scmp.ne.s32.totalorder %s91, %s92
    %p104 = scmp.eq.s32.totalorder %s17, 3
    %p105 = por %p103, %p104
    %p107 = scmp.ne.s32.totalorder %s92, %s106
    %p108 = scmp.eq.s32.totalorder %s17, 0
    %p109 = por %p107, %p108
    %s111 = sadd.s32 %s110, 1
    %p114 = scmp.eq.s32.totalorder %s11, 3
    %p115 = scmp.ne.s32.totalorder %s110, %s112
    %p116 = scmp.eq.s32.totalorder %s11, 0
    %p117 = por %p115, %p116
    %p118 = scmp.ne.s32.totalorder %s110, %s112
    %p119 = scmp.eq.s32.totalorder %s16, 3
    %p120 = por %p118, %p119
    %p121 = scmp.ne.s32.totalorder %s112, %s113
    %p122 = scmp.eq.s32.totalorder %s16, 0
    %p123 = por %p121, %p122
    %p124 = scmp.ne.s32.totalorder %s112, %s113
    %p125 = scmp.eq.s32.totalorder %s17, 3
    %p126 = por %p124, %p125
    %p128 = scmp.ne.s32.totalorder %s113, %s127
    %p129 = scmp.eq.s32.totalorder %s17, 0
    %p130 = por %p128, %p129
    %s132 = sadd.s32 %s131, 1
    %p135 = scmp.eq.s32.totalorder %s11, 3
    %p136 = scmp.ne.s32.totalorder %s131, %s133
    %p137 = scmp.eq.s32.totalorder %s11, 0
    %p138 = por %p136, %p137
    %p139 = scmp.ne.s32.totalorder %s131, %s133
    %p140 = scmp.eq.s32.totalorder %s16, 3
    %p141 = por %p139, %p140
    %p142 = scmp.ne.s32.totalorder %s133, %s134
    %p143 = scmp.eq.s32.totalorder %s16, 0
    %p144 = por %p142, %p143
    %p145 = scmp.ne.s32.totalorder %s133, %s134
    %p146 = scmp.eq.s32.totalorder %s17, 3
    %p147 = por %p145, %p146
    %p149 = scmp.ne.s32.totalorder %s134, %s148
    %p150 = scmp.eq.s32.totalorder %s17, 0
    %p151 = por %p149, %p150
    %s152 = ssub.s32 %s18, %s30
    %s153 = ssub.s32 %s19, %s26
    %s154 = sor.u32 %s152, %s153
    %p155 = scmp.eq.s32.totalorder %s154, 0
    %s157 = sadd.s32 %s156, 1
    %s158 = scalar_select %p155, %s156, %s157
    %p161 = pneg %p155
    %p162 = scmp.eq.s32.totalorder %s11, 3
    %p163 = por %p161, %p162
    %p164 = scmp.ne.s32.totalorder %s156, %s159
    %p165 = scmp.eq.s32.totalorder %s11, 0
    %p166 = por %p164, %p165
    %p167 = scmp.ne.s32.totalorder %s156, %s159
    %p168 = scmp.eq.s32.totalorder %s16, 3
    %p169 = por %p167, %p168
    %p170 = scmp.ne.s32.totalorder %s159, %s160
    %p171 = scmp.eq.s32.totalorder %s16, 0
    %p172 = por %p170, %p171
    %p173 = scmp.ne.s32.totalorder %s159, %s160
    %p174 = scmp.eq.s32.totalorder %s17, 3
    %p175 = por %p173, %p174
    %p177 = scmp.ne.s32.totalorder %s160, %s176
    %p178 = scmp.eq.s32.totalorder %s17, 0
    %p179 = por %p177, %p178
    %p180 = scmp.le.s32.totalorder 1, %s11
    %p181 = scmp.lt.s32.totalorder %s11, 5
    %p182 = pnand %p180, %p181
    %p183 = pneg %p182
    // Predicated region
    $region9: #{basic_conv_pallas.1} parent=5 // pred_check
      _
    $region10: #{basic_conv_pallas.1} parent=5 // pred_check_branch
      %185 = sbr.rel (%p182) target = $region12
    $region11: #{basic_conv_pallas.1} parent=5 // pred_region
      %s186 = ssub.s32 %s11, 1
      // Predicated region
      $region13: #{basic_conv_pallas.1} parent=11 // pred_check
        %p187 = pneg %p102
      $region14: #{basic_conv_pallas.1} parent=11 // pred_check_branch
        %189 = sbr.rel (%p187) target = $region16
      $region15: #{basic_conv_pallas.1} parent=11 // pred_region
        _
      $region16: #{basic_conv_pallas.1} parent=11 // pred_fallthru
        _
      // Predicated region
      $region17: #{basic_conv_pallas.1} parent=11 // pred_check
        %p190 = pneg %p123
      $region18: #{basic_conv_pallas.1} parent=11 // pred_check_branch
        %192 = sbr.rel (%p190) target = $region20
      $region19: #{basic_conv_pallas.1} parent=11 // pred_region
        _
      $region20: #{basic_conv_pallas.1} parent=11 // pred_fallthru
        _
      // Predicated region
      $region21: #{basic_conv_pallas.1} parent=11 // pred_check
        %p193 = pneg %p144
      $region22: #{basic_conv_pallas.1} parent=11 // pred_check_branch
        %195 = sbr.rel (%p193) target = $region24
      $region23: #{basic_conv_pallas.1} parent=11 // pred_region
        _
      $region24: #{basic_conv_pallas.1} parent=11 // pred_fallthru
        _
    $region12: #{basic_conv_pallas.1} parent=5 // pred_fallthru
      _
    %p196 = scmp.lt.s32.totalorder %s11, 4
    // Predicated region
    $region25: #{basic_conv_pallas.1} parent=5 // pred_check
      %p197 = pneg %p196
    $region26: #{basic_conv_pallas.1} parent=5 // pred_check_branch
      %199 = sbr.rel (%p197) target = $region28
    $region27: #{basic_conv_pallas.1} parent=5 // pred_region
      // Predicated region
      $region29: #{basic_conv_pallas.1} parent=27 // pred_check
        %p200 = pneg %p45
      $region30: #{basic_conv_pallas.1} parent=27 // pred_check_branch
        %202 = sbr.rel (%p200) target = $region32
      $region31: #{basic_conv_pallas.1} parent=27 // pred_region
        %s203 = smul.u32 2, %s19
        %p204 = scmp.lt.s32.totalorder %s18, 1
        %s205 = scalar_select %p204, %s18, 1
        %p206 = scmp.lt.s32.totalorder %s203, 5
        %s207 = scalar_select %p206, %s203, 5
        %s208 = smul.addr %s205, 6
        %s209 = sadd.s32 %s207, %s208
        %s210 = smul.addr %s209, 8
        %s211 = scalar_lea.vmem %s0, %s210
        %s212 = smul.u32 2, %s19
      $region32: #{basic_conv_pallas.1} parent=27 // pred_fallthru
        _
      // Predicated region
      $region33: #{basic_conv_pallas.1} parent=27 // pred_check
        %p213 = pneg %p75
      $region34: #{basic_conv_pallas.1} parent=27 // pred_check_branch
        %215 = sbr.rel (%p213) target = $region36
      $region35: #{basic_conv_pallas.1} parent=27 // pred_region
        %s216 = sadd.s32 %s19, 1
        %s217 = smul.u32 2, %s216
        %p218 = scmp.lt.s32.totalorder %s18, 1
        %s219 = scalar_select %p218, %s18, 1
        %p220 = scmp.lt.s32.totalorder %s217, 5
        %s221 = scalar_select %p220, %s217, 5
        %s222 = smul.addr %s219, 6
        %s223 = sadd.s32 %s221, %s222
        %s224 = smul.addr %s223, 8
        %s225 = scalar_lea.vmem %s1, %s224
        %s226 = sadd.s32 %s19, 1
        %s227 = smul.u32 2, %s226
      $region36: #{basic_conv_pallas.1} parent=27 // pred_fallthru
        _
    $region28: #{basic_conv_pallas.1} parent=5 // pred_fallthru
      _
    %p228 = scmp.le.s32.totalorder 1, %s11
    %p229 = scmp.lt.s32.totalorder %s11, 5
    %p230 = pnand %p228, %p229
    %p231 = pneg %p230
    // Predicated region
    $region37: #{basic_conv_pallas.1} parent=5 // pred_check
      _
    $region38: #{basic_conv_pallas.1} parent=5 // pred_check_branch
      %233 = sbr.rel (%p230) target = $region40
    $region39: #{basic_conv_pallas.1} parent=5 // pred_region
      %s234 = ssub.s32 %s11, 1
      %s235 = smul.u32 2, %s21
      %p236 = scmp.lt.s32.totalorder %s20, 1
      %s237 = scalar_select %p236, %s20, 1
      %p238 = scmp.lt.s32.totalorder %s235, 5
      %s239 = scalar_select %p238, %s235, 5
      %s240 = smul.addr %s237, 6
      %s241 = sadd.s32 %s239, %s240
      %s242 = smul.addr %s241, 8
      %s243 = scalar_lea.vmem %s0, %s242
      %p244 = pneg %p51
      %p245 = pneg %p48
      %s246 = sadd.s32 %s21, 1
      %s247 = smul.u32 2, %s246
      %p248 = scmp.lt.s32.totalorder %s20, 1
      %s249 = scalar_select %p248, %s20, 1
      %p250 = scmp.lt.s32.totalorder %s247, 5
      %s251 = scalar_select %p250, %s247, 5
      %s252 = smul.addr %s249, 6
      %s253 = sadd.s32 %s251, %s252
      %s254 = smul.addr %s253, 8
      %s255 = scalar_lea.vmem %s1, %s254
      %p256 = pneg %p81
      %p257 = pneg %p78
      %p258 = pneg %p102
      %p259 = pneg %p99
      %p260 = pneg %p123
      %p261 = pneg %p120
      %p262 = pneg %p144
      %p263 = pneg %p141
      %p264 = pneg %p172
      %p265 = pneg %p169
      %s266 = smul.u32 2, %s21
      %p267 = scmp.lt.s32.totalorder %s20, 1
      %s268 = scalar_select %p267, %s20, 1
      %p269 = scmp.lt.s32.totalorder %s266, 3
      %s270 = scalar_select %p269, %s266, 3
      %s271 = smul.addr %s268, 4
      %s272 = sadd.s32 %s270, %s271
      %s273 = smul.addr %s272, 8
      %s274 = scalar_lea.vmem %s5, %s273
      %s275 = smul.u32 2, %s21
      %p276 = scmp.lt.s32.totalorder %s20, 1
      %s277 = scalar_select %p276, %s20, 1
      %p278 = scmp.lt.s32.totalorder %s275, 5
      %s279 = scalar_select %p278, %s275, 5
      %s280 = smul.addr %s277, 6
      %s281 = sadd.s32 %s279, %s280
      %s282 = smul.addr %s281, 8
      %s283 = scalar_lea.vmem %s0, %s282
      %s284 = smul.u32 2, %s21
      %s285 = sadd.s32 %s21, 1
      %s286 = smul.u32 2, %s285
      %p287 = scmp.lt.s32.totalorder %s20, 1
      %s288 = scalar_select %p287, %s20, 1
      %p289 = scmp.lt.s32.totalorder %s286, 5
      %s290 = scalar_select %p289, %s286, 5
      %s291 = smul.addr %s288, 6
      %s292 = sadd.s32 %s290, %s291
      %s293 = smul.addr %s292, 8
      %s294 = scalar_lea.vmem %s1, %s293
      %s295 = sadd.s32 %s21, 1
      %s296 = smul.u32 2, %s295
      %s297 = smul.u32 2, %s21
      %p298 = scmp.lt.s32.totalorder %s20, 1
      %s299 = scalar_select %p298, %s20, 1
      %p300 = scmp.lt.s32.totalorder %s297, 3
      %s301 = scalar_select %p300, %s297, 3
      %s302 = smul.addr %s299, 4
      %s303 = sadd.s32 %s301, %s302
      %s304 = smul.addr %s303, 8
      %s305 = scalar_lea.vmem %s5, %s304
      %s306 = smul.u32 2, %s21
      %v307 = vld [vmem:[%s283] sm:$0xff]
      %v308 = vld [vmem:[%s283 + $0x8] sm:$0xff]
      %v309 = vld [vmem:[%s294] sm:$0xff]
      %313 = vrot.lane.b32.xlu0 %v307, 127
      %v314 = vpop.permute.xlu0 %313
      %315 = vrot.lane.b32.xlu0 %v308, 127
      %v316 = vpop.permute.xlu0 %315
      %317 = vrot.lane.b32.xlu0 %v309, 127
      %v318 = vpop.permute.xlu0 %317
      %vm319 = vcmask 1039360
      %v320 = vsel %vm319, %v314, %v316
      %v321 = vsel %vm319, %v316, %v318
      %324 = vrot.lane.b32.xlu0 %v307, 126
      %v325 = vpop.permute.xlu0 %324
      %326 = vrot.lane.b32.xlu0 %v308, 126
      %v327 = vpop.permute.xlu0 %326
      %328 = vrot.lane.b32.xlu0 %v309, 126
      %v329 = vpop.permute.xlu0 %328
      %vm330 = vcmask 1031168
      %v331 = vsel %vm330, %v325, %v327
      %v332 = vsel %vm330, %v327, %v329
      %335 = vrot.lane.b32.xlu0 %v307, 110
      %v336 = vpop.permute.xlu0 %335
      %337 = vrot.lane.b32.xlu0 %v308, 110
      %v338 = vpop.permute.xlu0 %337
      %339 = vrot.lane.b32.xlu0 %v309, 110
      %v340 = vpop.permute.xlu0 %339
      %vm341 = vcmask 900096
      %v342 = vsel %vm341, %v336, %v338
      %v343 = vsel %vm341, %v338, %v340
      %346 = vrot.lane.b32.xlu0 %v307, 109
      %v347 = vpop.permute.xlu0 %346
      %348 = vrot.lane.b32.xlu0 %v308, 109
      %v349 = vpop.permute.xlu0 %348
      %350 = vrot.lane.b32.xlu0 %v309, 109
      %v351 = vpop.permute.xlu0 %350
      %vm352 = vcmask 891904
      %v353 = vsel %vm352, %v347, %v349
      %v354 = vsel %vm352, %v349, %v351
      %357 = vrot.lane.b32.xlu0 %v307, 108
      %v358 = vpop.permute.xlu0 %357
      %359 = vrot.lane.b32.xlu0 %v308, 108
      %v360 = vpop.permute.xlu0 %359
      %361 = vrot.lane.b32.xlu0 %v309, 108
      %v362 = vpop.permute.xlu0 %361
      %vm363 = vcmask 883712
      %v364 = vsel %vm363, %v358, %v360
      %v365 = vsel %vm363, %v360, %v362
      %368 = vrot.lane.b32.xlu0 %v307, 92
      %v369 = vpop.permute.xlu0 %368
      %370 = vrot.lane.b32.xlu0 %v308, 92
      %v371 = vpop.permute.xlu0 %370
      %372 = vrot.lane.b32.xlu0 %v309, 92
      %v373 = vpop.permute.xlu0 %372
      %vm374 = vcmask 752640
      %v375 = vsel %vm374, %v369, %v371
      %v376 = vsel %vm374, %v371, %v373
      %379 = vrot.lane.b32.xlu0 %v307, 91
      %v380 = vpop.permute.xlu0 %379
      %381 = vrot.lane.b32.xlu0 %v308, 91
      %v382 = vpop.permute.xlu0 %381
      %383 = vrot.lane.b32.xlu0 %v309, 91
      %v384 = vpop.permute.xlu0 %383
      %vm385 = vcmask 744448
      %v386 = vsel %vm385, %v380, %v382
      %v387 = vsel %vm385, %v382, %v384
      %390 = vrot.lane.b32.xlu0 %v307, 90
      %v391 = vpop.permute.xlu0 %390
      %392 = vrot.lane.b32.xlu0 %v308, 90
      %v393 = vpop.permute.xlu0 %392
      %394 = vrot.lane.b32.xlu0 %v309, 90
      %v395 = vpop.permute.xlu0 %394
      %vm396 = vcmask 736256
      %v397 = vsel %vm396, %v391, %v393
      %v398 = vsel %vm396, %v393, %v395
      %v401 = vld [vmem:[%s2] sm:$0xff]
      %vm402 = vcmask 588800
      %v404 = vsel %vm402, %v401, 0
      %406 = vmatprep.subr.mxu0 %v308
      %407 = vmatpush1.msra.mxu0 %v307
      %408 = vmatprep.subr.mxu0 %v321
      %409 = vmatpush1.msra.mxu0 %v320
      %410 = vmatprep.subr.mxu0 %v332
      %411 = vmatpush1.msra.mxu0 %v331
      %412 = vmatprep.subr.mxu0 %v343
      %413 = vmatpush1.msra.mxu0 %v342
      %414 = vmatprep.subr.mxu0 %v354
      %415 = vmatpush1.msra.mxu0 %v353
      %416 = vmatprep.subr.mxu0 %v365
      %417 = vmatpush1.msra.mxu0 %v364
      %418 = vmatprep.subr.mxu0 %v376
      %419 = vmatpush1.msra.mxu0 %v375
      %420 = vmatprep.subr.mxu0 %v387
      %421 = vmatpush1.msra.mxu0 %v386
      %422 = vmatprep.subr.mxu0 %v398
      %423 = vmatpush1.msra.mxu0 %v397
      %424 = vmatprep.subr.mxu0 0.0
      %425 = vmatpush1.msra.mxu0 0.0
      %426 = vmatprep.subr.mxu0 0.0
      %427 = vmatpush1.msra.mxu0 0.0
      %428 = vmatprep.subr.mxu0 0.0
      %429 = vmatpush1.msra.mxu0 0.0
      %430 = vmatprep.subr.mxu0 0.0
      %431 = vmatpush1.msra.mxu0 0.0
      %432 = vmatprep.subr.mxu0 0.0
      %433 = vmatpush1.msra.mxu0 0.0
      %434 = vmatprep.subr.mxu0 0.0
      %435 = vmatpush1.msra.mxu0 0.0
      %436 = vmatprep.subr.mxu0 0.0
      %437 = vmatpush1.msra.mxu0 0.0
      %438 = vmatprep.subr.mxu0 0.0
      %439 = vmatpush1.msra.mxu0 0.0
      %440 = vmatprep.subr.mxu0 0.0
      %441 = vmatpush1.msra.mxu0 0.0
      %442 = vmatprep.subr.mxu0 0.0
      %443 = vmatpush1.msra.mxu0 0.0
      %444 = vmatprep.subr.mxu0 0.0
      %445 = vmatpush1.msra.mxu0 0.0
      %446 = vmatprep.subr.mxu0 0.0
      %447 = vmatpush1.msra.mxu0 0.0
      %448 = vmatprep.subr.mxu0 0.0
      %449 = vmatpush1.msra.mxu0 0.0
      %450 = vmatprep.subr.mxu0 0.0
      %451 = vmatpush1.msra.mxu0 0.0
      %452 = vmatprep.subr.mxu0 0.0
      %453 = vmatpush1.msra.mxu0 0.0
      %454 = vmatprep.subr.mxu0 0.0
      %455 = vmatpush1.msra.mxu0 0.0
      %456 = vmatprep.subr.mxu0 0.0
      %457 = vmatpush1.msra.mxu0 0.0
      %458 = vmatprep.subr.mxu0 0.0
      %459 = vmatpush1.msra.mxu0 0.0
      %460 = vmatprep.subr.mxu0 0.0
      %461 = vmatpush1.msra.mxu0 0.0
      %462 = vmatprep.subr.mxu0 0.0
      %463 = vmatpush1.msra.mxu0 0.0
      %464 = vmatprep.subr.mxu0 0.0
      %465 = vmatpush1.msra.mxu0 0.0
      %466 = vmatprep.subr.mxu0 0.0
      %467 = vmatpush1.msra.mxu0 0.0
      %468 = vmatprep.subr.mxu0 0.0
      %469 = vmatpush1.msra.mxu0 0.0
      %470 = vmatprep.mubr.f32.mxu0 0.0
      %471 = vmatmul.mubr.f32.gmra.mrb[0].mxu0 %v404
      %v472 = vpop.f32.mrb[0].mxu0
      %v473 = vadd.f32 0.0, %v472
      %v474 = vpop.f32.mrb[0].mxu0
      %v475 = vadd.f32 0.0, %v474
      %476 = vdwg.mxu0
      %v477 = vld [vmem:[%s3] sm:$0xff]
      %479 = vset.pattern.permute.xlu0 0
      %480 = vperm.xlu0 %479, %v477
      %v481 = vpop.permute.xlu0 %480
      %v483 = vmul.f32 %v473, %v481
      %v484 = vmul.f32 %v475, %v481
      %v485 = vld [vmem:[%s4] sm:$0xff]
      %487 = vset.pattern.permute.xlu0 0
      %488 = vperm.xlu0 %487, %v485
      %v489 = vpop.permute.xlu0 %488
      %v491 = vadd.f32 %v483, %v489
      %v492 = vadd.f32 %v484, %v489
      %v493 = vmax.f32 %v491, 0.0
      %v494 = vmax.f32 %v492, 0.0
      %495 = vst [vmem:[%s305] sm:$0xff] %v493
      %496 = vst [vmem:[%s305 + $0x8] sm:$0xff] %v494
      %s497 = smul.u32 2, %s21
      %p498 = scmp.lt.s32.totalorder %s20, 1
      %s499 = scalar_select %p498, %s20, 1
      %p500 = scmp.lt.s32.totalorder %s497, 3
      %s501 = scalar_select %p500, %s497, 3
      %s502 = smul.addr %s499, 4
      %s503 = sadd.s32 %s501, %s502
      %s504 = smul.addr %s503, 8
      %s505 = scalar_lea.vmem %s5, %s504
      // Predicated region
      $region41: #{basic_conv_pallas.1} parent=39 // pred_check
        %p506 = pneg %p169
      $region42: #{basic_conv_pallas.1} parent=39 // pred_check_branch
        %508 = sbr.rel (%p506) target = $region44
      $region43: #{basic_conv_pallas.1} parent=39 // pred_region
        %s509 = smul.u32 2, %s21
      $region44: #{basic_conv_pallas.1} parent=39 // pred_fallthru
        _
    $region40: #{basic_conv_pallas.1} parent=5 // pred_fallthru
      _
    %p510 = scmp.le.s32.totalorder 2, %s11
    // Predicated region
    $region45: #{basic_conv_pallas.1} parent=5 // pred_check
      %p511 = pneg %p510
    $region46: #{basic_conv_pallas.1} parent=5 // pred_check_branch
      %513 = sbr.rel (%p511) target = $region48
    $region47: #{basic_conv_pallas.1} parent=5 // pred_region
      %s514 = ssub.s32 %s11, 2
      // Predicated region
      $region49: #{basic_conv_pallas.1} parent=47 // pred_check
        %p515 = pneg %p175
      $region50: #{basic_conv_pallas.1} parent=47 // pred_check_branch
        %517 = sbr.rel (%p515) target = $region52
      $region51: #{basic_conv_pallas.1} parent=47 // pred_region
        %s518 = smul.u32 2, %s23
        %p519 = scmp.lt.s32.totalorder %s22, 1
        %s520 = scalar_select %p519, %s22, 1
        %p521 = scmp.lt.s32.totalorder %s518, 3
        %s522 = scalar_select %p521, %s518, 3
        %s523 = smul.addr %s520, 4
        %s524 = sadd.s32 %s522, %s523
        %s525 = smul.addr %s524, 8
        %s526 = scalar_lea.vmem %s5, %s525
      $region52: #{basic_conv_pallas.1} parent=47 // pred_fallthru
        _
    $region48: #{basic_conv_pallas.1} parent=5 // pred_fallthru
      _
  $region6: #{basic_conv_pallas.1} parent=0 // loop_footer
    %s15 = sadd.s32 1, %s11
  $region7: #{basic_conv_pallas.1} parent=0 // loop_footer_branch
    %10 = sbr.rel target = $region3
  $region8: #{basic_conv_pallas.1} parent=0 // loop_exit
    _

</llo_original>
